<compile_context>
chip_gen: v7x
topology: tpu7x:2x2x1
jax: 0.10.0
libtpu: 0.0.40
codegen_flags: <defaults>
</compile_context>

<pallas_src>
import functools

import jax
import jax.numpy as jnp
from jax.experimental import pallas as pl
from jax.experimental.pallas import tpu as pltpu

_LANE = 128       # lane width (last-dim tiling)
_SUBLANE_BF16 = 16  # bf16 sublane packing for the batch tile


def _round_up(x, m):
    return ((x + m - 1) // m) * m


def _fused_mlp_kernel(x_ref, *refs, num_hidden):
    """One batch tile through the whole MLP; intermediates never leave VMEM.

    refs = (w0, b0, ..., w_{H-1}, b_{H-1}, w_last_row, b_last, o_ref)
    """
    o_ref = refs[-1]
    # f32 -> bf16 cast happens in-kernel (no extra HBM pass in the wrapper).
    h = x_ref[...].astype(jnp.bfloat16)
    for i in range(num_hidden):
        w_ref = refs[2 * i]
        b_ref = refs[2 * i + 1]
        # bf16 x bf16 -> f32 accumulation on the MXU.
        y = jnp.dot(h, w_ref[...], preferred_element_type=jnp.float32)
        y = y + b_ref[...]                       # (1, out_pad) broadcasts over rows
        h = jnp.maximum(y, 0.0).astype(jnp.bfloat16)  # ReLU, bf16 for next MXU pass
    # Final Linear(dim, 1): VPU multiply + cross-lane reduce instead of a
    # 128-wide dot + 128-wide f32 writeback. Padded lanes of h and w_row are 0.
    w_row = refs[2 * num_hidden][...]            # (1, d_pad) f32
    b_last = refs[2 * num_hidden + 1][...]       # (1, 1) f32
    y = jnp.sum(h.astype(jnp.float32) * w_row, axis=-1, keepdims=True) + b_last
    # Exact sigmoid (runs on a (tb, 1) column — negligible cost).
    o_ref[...] = 1.0 / (1.0 + jnp.exp(-y))


def init_discriminator_params(key, embedding_dim, decompress_dims):
    """Parameters matching the PyTorch module's layer shapes.

    Hidden layers: bf16 weights (in[_pad], out_pad), f32 biases (1, out_pad),
    zero-padded to 128 output lanes (padding keeps the math exact).
    Layer 0 keeps the REAL input width (no 128-lane padding of x needed).
    Final layer: stored as a f32 row (1, last_pad) plus a (1, 1) bias.
    """
    hidden = []
    dim = embedding_dim
    in_pad = embedding_dim  # layer 0 reads x at its real width
    for out_dim in decompress_dims:
        key, kw, kb = jax.random.split(key, 3)
        bound = float(dim) ** -0.5
        w = jax.random.uniform(kw, (dim, out_dim), jnp.float32, -bound, bound)
        b = jax.random.uniform(kb, (out_dim,), jnp.float32, -bound, bound)
        out_pad = _round_up(out_dim, _LANE)
        w_pad = (
            jnp.zeros((in_pad, out_pad), jnp.bfloat16)
            .at[:dim, :out_dim]
            .set(w.astype(jnp.bfloat16))
        )
        b_pad = jnp.zeros((1, out_pad), jnp.float32).at[0, :out_dim].set(b)
        hidden.append((w_pad, b_pad))
        dim = out_dim
        in_pad = out_pad
    # Final Linear(dim, 1) stored as a row vector over the padded last width.
    key, kw, kb = jax.random.split(key, 3)
    bound = float(dim) ** -0.5
    w_last = jax.random.uniform(kw, (dim,), jnp.float32, -bound, bound)
    b_last = jax.random.uniform(kb, (1, 1), jnp.float32, -bound, bound)
    w_row = jnp.zeros((1, in_pad), jnp.float32).at[0, :dim].set(w_last)
    return hidden, w_row, b_last


def discriminator_forward(params, x):
    """Single fused pallas_call over the whole MLP, gridded over the batch."""
    hidden, w_row, b_last = params
    B, d_in = x.shape
    num_hidden = len(hidden)

    # Batch tile: up to 1024 rows, multiple of 16 (bf16 sublane packing).
    # cdiv(B, 2) so large batches get >= 2 grid steps (both v7x TensorCores busy).
    tb = min(1024, _round_up(pl.cdiv(B, 2), _SUBLANE_BF16))
    b_pad = _round_up(B, tb)

    # Row-only padding (zeros) so every tile is full; padded rows produce finite
    # sigmoid values and are sliced away below.
    if b_pad != B:
        x = jnp.pad(x, ((0, b_pad - B), (0, 0)))

    in_specs = [pl.BlockSpec((tb, d_in), lambda i: (i, 0))]
    flat_args = [x]
    for w, b in hidden:
        # Whole weight/bias resident in VMEM across all grid steps (constant
        # index_map -> no re-fetch; footprint is ~100 KiB so default buffering
        # is fine).
        in_specs.append(pl.BlockSpec(w.shape, lambda i: (0, 0)))
        in_specs.append(pl.BlockSpec(b.shape, lambda i: (0, 0)))
        flat_args.extend([w, b])
    in_specs.append(pl.BlockSpec(w_row.shape, lambda i: (0, 0)))
    in_specs.append(pl.BlockSpec((1, 1), lambda i: (0, 0)))
    flat_args.extend([w_row, b_last])

    out_specs = pl.BlockSpec((tb, 1), lambda i: (i, 0))

    kernel = functools.partial(_fused_mlp_kernel, num_hidden=num_hidden)
    out = pl.pallas_call(
        kernel,
        out_shape=jax.ShapeDtypeStruct((b_pad, 1), jnp.float32),
        grid=(b_pad // tb,),
        in_specs=in_specs,
        out_specs=out_specs,
        compiler_params=pltpu.CompilerParams(
            dimension_semantics=("parallel",),  # megacore sharding on v7x
            # vmem_limit_bytes intentionally omitted: real per-step footprint is
            # < 1 MiB (x tile + (tb,1) out tile double-buffered + small weights),
            # well under every generation's scoped default.
        ),
    )(*flat_args)

    return out[:B]


def _reference_forward(params, x):
    """Pure-JAX reference with the same padded-bf16 math (for validation)."""
    hidden, w_row, b_last = params
    h = x.astype(jnp.bfloat16)
    for w, b in hidden:
        y = jnp.dot(h, w, preferred_element_type=jnp.float32) + b
        h = jnp.maximum(y, 0.0).astype(jnp.bfloat16)
    y = jnp.sum(h.astype(jnp.float32) * w_row, axis=-1, keepdims=True) + b_last
    return 1.0 / (1.0 + jnp.exp(-y))


if __name__ == "__main__":
    # Small, deterministic example consistent with the module's forward.
    batch = 8
    embedding_dim = 32
    decompress_dims = (64, 32)
    data_dim = 16  # unused by Discriminator.forward (matches the PyTorch module)

    key = jax.random.PRNGKey(0)
    key, kx = jax.random.split(key)
    x = jax.random.normal(kx, (batch, embedding_dim), jnp.float32)

    params = init_discriminator_params(key, embedding_dim, decompress_dims)

    out = discriminator_forward(params, x)
    out = jax.block_until_ready(out)

    assert out.shape == (batch, 1), out.shape
    # Exact sigmoid output must be in [0, 1].
    assert bool(jnp.all((out >= 0.0) & (out <= 1.0)))
    ref = _reference_forward(params, x)
    assert bool(jnp.allclose(out, ref, atol=1e-3, rtol=1e-3)), (out, ref)
    print("KERNEL_OK")
</pallas_src>

<mosaic_0001>
module attributes {stable_mosaic.version = 11 : i64} {
  func.func @_fused_mlp_kernel(%arg0: i32, %arg1: memref<16x32xf32, #tpu.memory_space<vmem>>, %arg2: memref<32x128xbf16, #tpu.memory_space<vmem>>, %arg3: memref<1x128xf32, #tpu.memory_space<vmem>>, %arg4: memref<128x128xbf16, #tpu.memory_space<vmem>>, %arg5: memref<1x128xf32, #tpu.memory_space<vmem>>, %arg6: memref<1x128xf32, #tpu.memory_space<vmem>>, %arg7: memref<1x1xf32, #tpu.memory_space<vmem>>, %arg8: memref<16x1xf32, #tpu.memory_space<vmem>>) attributes {dimension_semantics = [#tpu.dimension_semantics<parallel>], iteration_bounds = array<i64: 1>, scalar_prefetch = 0 : i64, scratch_operands = 0 : i64, tpu.core_type = #tpu.core_type<tc>, window_params = [{transform_indices = @transform_0, window_bounds = array<i64: 16, 32>}, {pipeline_mode = #tpu.pipeline_mode<synchronous>, transform_indices = @transform_1, window_bounds = array<i64: 32, 128>}, {pipeline_mode = #tpu.pipeline_mode<synchronous>, transform_indices = @transform_2, window_bounds = array<i64: 1, 128>}, {pipeline_mode = #tpu.pipeline_mode<synchronous>, transform_indices = @transform_3, window_bounds = array<i64: 128, 128>}, {pipeline_mode = #tpu.pipeline_mode<synchronous>, transform_indices = @transform_4, window_bounds = array<i64: 1, 128>}, {pipeline_mode = #tpu.pipeline_mode<synchronous>, transform_indices = @transform_5, window_bounds = array<i64: 1, 128>}, {pipeline_mode = #tpu.pipeline_mode<synchronous>, transform_indices = @transform_6, window_bounds = array<i64: 1, 1>}, {transform_indices = @transform_7, window_bounds = array<i64: 16, 1>}]} {
    %c0 = arith.constant 0 : index
    %c0_0 = arith.constant 0 : index
    %0 = vector.load %arg1[%c0, %c0_0] : memref<16x32xf32, #tpu.memory_space<vmem>>, vector<16x32xf32>
    %1 = arith.truncf %0 : vector<16x32xf32> to vector<16x32xbf16>
    %c0_1 = arith.constant 0 : index
    %c0_2 = arith.constant 0 : index
    %2 = vector.load %arg2[%c0_1, %c0_2] : memref<32x128xbf16, #tpu.memory_space<vmem>>, vector<32x128xbf16>
    %cst = arith.constant dense<0.000000e+00> : vector<16x128xf32>
    %3 = tpu.matmul %1, %2, %cst {dimension_numbers = #tpu.dot_dimension_numbers<[1], [0], [0], [1], [0, 0, 1, 1], [], []>} : vector<16x32xbf16>, vector<32x128xbf16>, vector<16x128xf32> -> vector<16x128xf32>
    %c0_3 = arith.constant 0 : index
    %c0_4 = arith.constant 0 : index
    %4 = vector.load %arg3[%c0_3, %c0_4] : memref<1x128xf32, #tpu.memory_space<vmem>>, vector<1x128xf32>
    %5 = vector.broadcast %4 : vector<1x128xf32> to vector<16x128xf32>
    %6 = arith.addf %3, %5 : vector<16x128xf32>
    %cst_5 = arith.constant 0.000000e+00 : f32
    %7 = vector.broadcast %cst_5 : f32 to vector<16x128xf32>
    %8 = arith.maximumf %6, %7 : vector<16x128xf32>
    %9 = arith.truncf %8 : vector<16x128xf32> to vector<16x128xbf16>
    %c0_6 = arith.constant 0 : index
    %c0_7 = arith.constant 0 : index
    %10 = vector.load %arg4[%c0_6, %c0_7] : memref<128x128xbf16, #tpu.memory_space<vmem>>, vector<128x128xbf16>
    %cst_8 = arith.constant dense<0.000000e+00> : vector<16x128xf32>
    %11 = tpu.matmul %9, %10, %cst_8 {dimension_numbers = #tpu.dot_dimension_numbers<[1], [0], [0], [1], [0, 0, 1, 1], [], []>} : vector<16x128xbf16>, vector<128x128xbf16>, vector<16x128xf32> -> vector<16x128xf32>
    %c0_9 = arith.constant 0 : index
    %c0_10 = arith.constant 0 : index
    %12 = vector.load %arg5[%c0_9, %c0_10] : memref<1x128xf32, #tpu.memory_space<vmem>>, vector<1x128xf32>
    %13 = vector.broadcast %12 : vector<1x128xf32> to vector<16x128xf32>
    %14 = arith.addf %11, %13 : vector<16x128xf32>
    %cst_11 = arith.constant 0.000000e+00 : f32
    %15 = vector.broadcast %cst_11 : f32 to vector<16x128xf32>
    %16 = arith.maximumf %14, %15 : vector<16x128xf32>
    %17 = arith.truncf %16 : vector<16x128xf32> to vector<16x128xbf16>
    %c0_12 = arith.constant 0 : index
    %c0_13 = arith.constant 0 : index
    %18 = vector.load %arg6[%c0_12, %c0_13] : memref<1x128xf32, #tpu.memory_space<vmem>>, vector<1x128xf32>
    %c0_14 = arith.constant 0 : index
    %c0_15 = arith.constant 0 : index
    %19 = vector.load %arg7[%c0_14, %c0_15] : memref<1x1xf32, #tpu.memory_space<vmem>>, vector<1x1xf32>
    %20 = arith.extf %17 : vector<16x128xbf16> to vector<16x128xf32>
    %21 = vector.broadcast %18 : vector<1x128xf32> to vector<16x128xf32>
    %22 = arith.mulf %20, %21 : vector<16x128xf32>
    %cst_16 = arith.constant dense<0.000000e+00> : vector<16xf32>
    %23 = vector.multi_reduction <add>, %22, %cst_16 [1] : vector<16x128xf32> to vector<16xf32>
    %24 = vector.shape_cast %23 : vector<16xf32> to vector<16x1xf32>
    %25 = vector.broadcast %19 : vector<1x1xf32> to vector<16x1xf32>
    %26 = arith.addf %24, %25 : vector<16x1xf32>
    %cst_17 = arith.constant 0.000000e+00 : f32
    %27 = vector.broadcast %cst_17 : f32 to vector<16x1xf32>
    %28 = arith.subf %27, %26 : vector<16x1xf32>
    %29 = math.exp %28 : vector<16x1xf32>
    %cst_18 = arith.constant 1.000000e+00 : f32
    %30 = vector.broadcast %cst_18 : f32 to vector<16x1xf32>
    %31 = arith.addf %30, %29 : vector<16x1xf32>
    %cst_19 = arith.constant 1.000000e+00 : f32
    %32 = vector.broadcast %cst_19 : f32 to vector<16x1xf32>
    %33 = arith.divf %32, %31 : vector<16x1xf32>
    %c0_20 = arith.constant 0 : index
    %c0_21 = arith.constant 0 : index
    %34 = vector.load %arg8[%c0_20, %c0_21] : memref<16x1xf32, #tpu.memory_space<vmem>>, vector<16x1xf32>
    tpu.vector_store %arg8[%c0_20, %c0_21], %33 {strides = array<i32>} : memref<16x1xf32, #tpu.memory_space<vmem>>, vector<16x1xf32>,
    return
  }
  func.func @transform_0(%arg0: i32) -> (i32, i32) {
    %c0_i32 = arith.constant 0 : i32
    %c0_i32_0 = arith.constant 0 : i32
    return %arg0, %c0_i32 : i32, i32
  }
  func.func @transform_1(%arg0: i32) -> (i32, i32) {
    %c0_i32 = arith.constant 0 : i32
    %c0_i32_0 = arith.constant 0 : i32
    %c0_i32_1 = arith.constant 0 : i32
    return %c0_i32, %c0_i32_0 : i32, i32
  }
  func.func @transform_2(%arg0: i32) -> (i32, i32) {
    %c0_i32 = arith.constant 0 : i32
    %c0_i32_0 = arith.constant 0 : i32
    %c0_i32_1 = arith.constant 0 : i32
    return %c0_i32, %c0_i32_0 : i32, i32
  }
  func.func @transform_3(%arg0: i32) -> (i32, i32) {
    %c0_i32 = arith.constant 0 : i32
    %c0_i32_0 = arith.constant 0 : i32
    %c0_i32_1 = arith.constant 0 : i32
    return %c0_i32, %c0_i32_0 : i32, i32
  }
  func.func @transform_4(%arg0: i32) -> (i32, i32) {
    %c0_i32 = arith.constant 0 : i32
    %c0_i32_0 = arith.constant 0 : i32
    %c0_i32_1 = arith.constant 0 : i32
    return %c0_i32, %c0_i32_0 : i32, i32
  }
  func.func @transform_5(%arg0: i32) -> (i32, i32) {
    %c0_i32 = arith.constant 0 : i32
    %c0_i32_0 = arith.constant 0 : i32
    %c0_i32_1 = arith.constant 0 : i32
    return %c0_i32, %c0_i32_0 : i32, i32
  }
  func.func @transform_6(%arg0: i32) -> (i32, i32) {
    %c0_i32 = arith.constant 0 : i32
    %c0_i32_0 = arith.constant 0 : i32
    %c0_i32_1 = arith.constant 0 : i32
    return %c0_i32, %c0_i32_0 : i32, i32
  }
  func.func @transform_7(%arg0: i32) -> (i32, i32) {
    %c0_i32 = arith.constant 0 : i32
    %c0_i32_0 = arith.constant 0 : i32
    return %arg0, %c0_i32 : i32, i32
  }
}

</mosaic_0001>

<llo_original>
// kernel: tpu_custom_call.1
$region0: #{tpu_custom_call.1}
  #allocation0 [shape = 'u32[]', space=smem, size = 0x4, offset = 0x4, fixed_abs, tag = 'smem constant byte address 0x4 - core index']
  #allocation1 [shape = 'u32[144,128]{1,0:T(1,128)}', space=vmem, size = 0x12000, scoped, tag = 'internal scratch']
  #allocation2 [shape = 'f32[1,1]{1,0:T(1,128)S(1)}', space=vmem, size = 0x200, scoped, tag = 'scoped memory for tpu_custom_call.1']
  %s0 = inlined_call_operand.hbm [shape: f32[16,32], index: 0, kind: input, shape index: {}]
  %s1 = inlined_call_operand.hbm [shape: bf16[32,128], index: 1, kind: input, shape index: {}]
  %s2 = inlined_call_operand.vmem [shape: f32[1,128], index: 2, kind: input, shape index: {}]
  %s3 = inlined_call_operand.hbm [shape: bf16[128,128], index: 3, kind: input, shape index: {}]
  %s4 = inlined_call_operand.vmem [shape: f32[1,128], index: 4, kind: input, shape index: {}]
  %s5 = inlined_call_operand.vmem [shape: f32[1,128], index: 5, kind: input, shape index: {}]
  %s6 = inlined_call_operand.<no memory space> [shape: f32[1,1], index: 6, kind: input, shape index: {}]
  %s7 = inlined_call_operand.vmem [shape: f32[16,1], index: 7, kind: output, shape index: {}]
  %s8 = sld [smem:[#allocation0]]
  $region50: #{tpu_custom_call.1} parent=0
    _
  %s10 = ssub.s32 1, %s8
  %s11 = scalar_select 0, %s10, %s8
  %v12 = vstv %s6
  %13 = vst [vmem:[#allocation2] sm:$0x1] %v12
  $region1: #{tpu_custom_call.1} parent=0
    #allocation3 [shape = 'u8[8192]{0}', space=vmem, size = 0x2000, scoped, tag = 'input window, operand 0, single buffered']
    #allocation4 [shape = 's32[1]{0}', space=sflag, size = 0x4, scoped, tag = 'scoped memory for tpu_custom_call.1']
    #allocation5 [shape = 'u8[8192]{0}', space=vmem, size = 0x2000, scoped, tag = 'input window, operand 1, single buffered']
    #allocation6 [shape = 's32[1]{0}', space=sflag, size = 0x4, scoped, tag = 'scoped memory for tpu_custom_call.1']
    #allocation7 [shape = 'u8[32768]{0}', space=vmem, size = 0x8000, scoped, tag = 'input window, operand 3, single buffered']
    %14 = vsyncpa [#allocation4], 0
    %15 = vsyncpa [#allocation6], 0
    // Predicated region
    $region2: #{tpu_custom_call.1} parent=1 // pred_check
      _
    $region3: #{tpu_custom_call.1} parent=1 // pred_check_branch
      %17 = sbr.rel (0) target = $region5
    $region4: #{tpu_custom_call.1} parent=1 // pred_region
      %s19 = ssub.s32 256, 256
      %20 = vsyncadd [#allocation4], %s19
      %s21 = sshll.u32 [#allocation3], 4
      %s22 = int_to_ptr.vmem [resolvable:$true] %s21
      %27 = dma.hbm_to_vmem [thread:$0]  %s0, 256, %s22, [#allocation4], 128, 128, 8
    $region5: #{tpu_custom_call.1} parent=1 // pred_fallthru
      _
    // Predicated region
    $region6: #{tpu_custom_call.1} parent=1 // pred_check
      _
    $region7: #{tpu_custom_call.1} parent=1 // pred_check_branch
      %29 = sbr.rel (0) target = $region9
    $region8: #{tpu_custom_call.1} parent=1 // pred_region
      %s31 = ssub.s32 256, 256
      %32 = vsyncadd [#allocation6], %s31
      %s33 = sshll.u32 [#allocation5], 4
      %s34 = int_to_ptr.vmem [resolvable:$true] %s33
      %39 = dma.hbm_to_vmem [thread:$0]  %s1, 256, %s34, [#allocation6], 64, 64, 4
    $region9: #{tpu_custom_call.1} parent=1 // pred_fallthru
      _
    // Predicated region
    $region10: #{tpu_custom_call.1} parent=1 // pred_check
      _
    $region11: #{tpu_custom_call.1} parent=1 // pred_check_branch
      %41 = sbr.rel (0) target = $region13
    $region12: #{tpu_custom_call.1} parent=1 // pred_region
      _
    $region13: #{tpu_custom_call.1} parent=1 // pred_fallthru
      _
    // Predicated region
    $region14: #{tpu_custom_call.1} parent=1 // pred_check
      _
    $region15: #{tpu_custom_call.1} parent=1 // pred_check_branch
      %43 = sbr.rel (0) target = $region17
    $region16: #{tpu_custom_call.1} parent=1 // pred_region
      %s45 = ssub.s32 1024, 1024
      %46 = vsyncadd [#allocation6], %s45
      %s47 = sshll.u32 [#allocation7], 4
      %s48 = int_to_ptr.vmem [resolvable:$true] %s47
      %53 = dma.hbm_to_vmem [thread:$0]  %s3, 1024, %s48, [#allocation6], 64, 64, 4
    $region17: #{tpu_custom_call.1} parent=1 // pred_fallthru
      _
    // Predicated region
    $region18: #{tpu_custom_call.1} parent=1 // pred_check
      _
    $region19: #{tpu_custom_call.1} parent=1 // pred_check_branch
      %55 = sbr.rel (0) target = $region21
    $region20: #{tpu_custom_call.1} parent=1 // pred_region
      _
    $region21: #{tpu_custom_call.1} parent=1 // pred_fallthru
      _
    // Predicated region
    $region22: #{tpu_custom_call.1} parent=1 // pred_check
      _
    $region23: #{tpu_custom_call.1} parent=1 // pred_check_branch
      %57 = sbr.rel (0) target = $region25
    $region24: #{tpu_custom_call.1} parent=1 // pred_region
      _
    $region25: #{tpu_custom_call.1} parent=1 // pred_fallthru
      _
    // Predicated region
    $region26: #{tpu_custom_call.1} parent=1 // pred_check
      _
    $region27: #{tpu_custom_call.1} parent=1 // pred_check_branch
      %59 = sbr.rel (0) target = $region29
    $region28: #{tpu_custom_call.1} parent=1 // pred_region
      _
    $region29: #{tpu_custom_call.1} parent=1 // pred_fallthru
      _
    // Predicated region
    $region30: #{tpu_custom_call.1} parent=1 // pred_check
      _
    $region31: #{tpu_custom_call.1} parent=1 // pred_check_branch
      %61 = sbr.rel (0) target = $region33
    $region32: #{tpu_custom_call.1} parent=1 // pred_region
      %62 = dma.done [#allocation4], 256
    $region33: #{tpu_custom_call.1} parent=1 // pred_fallthru
      _
    // Predicated region
    $region34: #{tpu_custom_call.1} parent=1 // pred_check
      _
    $region35: #{tpu_custom_call.1} parent=1 // pred_check_branch
      %64 = sbr.rel (0) target = $region37
    $region36: #{tpu_custom_call.1} parent=1 // pred_region
      %65 = dma.done [#allocation6], 256
    $region37: #{tpu_custom_call.1} parent=1 // pred_fallthru
      _
    // Predicated region
    $region38: #{tpu_custom_call.1} parent=1 // pred_check
      _
    $region39: #{tpu_custom_call.1} parent=1 // pred_check_branch
      %67 = sbr.rel (0) target = $region41
    $region40: #{tpu_custom_call.1} parent=1 // pred_region
      %68 = dma.done [#allocation6], 1024
    $region41: #{tpu_custom_call.1} parent=1 // pred_fallthru
      _
    %v70 = vld [vmem:[#allocation3] sm:$0xff]
    %v71 = vld [vmem:[#allocation3 + $0x8] sm:$0xff]
    %v72 = vpack.c.bf16 %v71, %v70
    %v73 = vld [vmem:[#allocation5] sm:$0xf]
    %v74 = vld [vmem:[#allocation5 + $0x4] sm:$0xf]
    %v75 = vld [vmem:[#allocation5 + $0x8] sm:$0xf]
    %v76 = vld [vmem:[#allocation5 + $0xc] sm:$0xf]
    %v77 = vld [vmem:[%s2] sm:$0x1]
    %v79 = vlaneseq
    %v80 = vshrl.u32 %v79, 7
    %v81 = vsub.s32 0, %v80
    %v82 = vrot.slane %v77, %v81
    %v88 = vunpack.c.l.b16 %v73
    %v89 = vunpack.c.l.b16 %v74
    %v90 = vunpack.c.l.b16 %v75
    %v91 = vunpack.c.l.b16 %v76
    %v92 = vpack.c.b16 %v89, %v88
    %v93 = vpack.c.b16 %v91, %v90
    %vm96 = vcmask 261120
    %v98 = vsel %vm96, %v72, 0
    %100 = vmatprep.subr.bf16.mxu0 0
    %101 = vmatpush1.bf16.msra.mxu0 %v92
    %102 = vmatprep.subr.bf16.mxu0 0
    %103 = vmatpush1.bf16.msra.mxu0 %v93
    %104 = vmatprep.subr.bf16.mxu0 0
    %105 = vmatpush1.bf16.msra.mxu0 0
    %106 = vmatprep.subr.bf16.mxu0 0
    %107 = vmatpush1.bf16.msra.mxu0 0
    %108 = vmatprep.subr.bf16.mxu0 0
    %109 = vmatpush1.bf16.msra.mxu0 0
    %110 = vmatprep.subr.bf16.mxu0 0
    %111 = vmatpush1.bf16.msra.mxu0 0
    %112 = vmatprep.subr.bf16.mxu0 0
    %113 = vmatpush1.bf16.msra.mxu0 0
    %114 = vmatprep.subr.bf16.mxu0 0
    %115 = vmatpush1.bf16.msra.mxu0 0
    %116 = vmatprep.subr.bf16.mxu0 0
    %117 = vmatpush1.bf16.msra.mxu0 0
    %118 = vmatprep.subr.bf16.mxu0 0
    %119 = vmatpush1.bf16.msra.mxu0 0
    %120 = vmatprep.subr.bf16.mxu0 0
    %121 = vmatpush1.bf16.msra.mxu0 0
    %122 = vmatprep.subr.bf16.mxu0 0
    %123 = vmatpush1.bf16.msra.mxu0 0
    %124 = vmatprep.subr.bf16.mxu0 0
    %125 = vmatpush1.bf16.msra.mxu0 0
    %126 = vmatprep.subr.bf16.mxu0 0
    %127 = vmatpush1.bf16.msra.mxu0 0
    %128 = vmatprep.subr.bf16.mxu0 0
    %129 = vmatpush1.bf16.msra.mxu0 0
    %130 = vmatprep.subr.bf16.mxu0 0
    %131 = vmatpush1.bf16.msra.mxu0 0
    %132 = vmatprep.mubr.bf16.mxu0 0
    %133 = vmatmul.mubr.bf16.gmra.mrb[0].mxu0 %v98
    %v134 = vpop.f32.mrb[0].mxu0
    %v135 = vadd.f32 %v82, %v134
    %v136 = vpop.f32.mrb[0].mxu0
    %v137 = vpop.f32.mrb[0].mxu0
    %v138 = vadd.f32 %v82, %v137
    %v139 = vpop.f32.mrb[0].mxu0
    %140 = vdwg.mxu0
    %v141 = vmax.f32 %v135, 0.0
    %v142 = vmax.f32 %v138, 0.0
    %v143 = vpack.c.bf16 %v142, %v141
    %v144 = vld [vmem:[#allocation7] sm:$0xf]
    %v145 = vld [vmem:[#allocation7 + $0x4] sm:$0xf]
    %v146 = vld [vmem:[#allocation7 + $0x8] sm:$0xf]
    %v147 = vld [vmem:[#allocation7 + $0xc] sm:$0xf]
    %v148 = vld [vmem:[#allocation7 + $0x10] sm:$0xf]
    %v149 = vld [vmem:[#allocation7 + $0x14] sm:$0xf]
    %v150 = vld [vmem:[#allocation7 + $0x18] sm:$0xf]
    %v151 = vld [vmem:[#allocation7 + $0x1c] sm:$0xf]
    %v152 = vld [vmem:[#allocation7 + $0x20] sm:$0xf]
    %v153 = vld [vmem:[#allocation7 + $0x24] sm:$0xf]
    %v154 = vld [vmem:[#allocation7 + $0x28] sm:$0xf]
    %v155 = vld [vmem:[#allocation7 + $0x2c] sm:$0xf]
    %v156 = vld [vmem:[#allocation7 + $0x30] sm:$0xf]
    %v157 = vld [vmem:[#allocation7 + $0x34] sm:$0xf]
    %v158 = vld [vmem:[#allocation7 + $0x38] sm:$0xf]
    %v159 = vld [vmem:[#allocation7 + $0x3c] sm:$0xf]
    %v160 = vld [vmem:[%s4] sm:$0x1]
    %v162 = vlaneseq
    %v163 = vshrl.u32 %v162, 7
    %v164 = vsub.s32 0, %v163
    %v165 = vrot.slane %v160, %v164
    %v183 = vunpack.c.l.b16 %v144
    %v184 = vunpack.c.l.b16 %v145
    %v185 = vunpack.c.l.b16 %v146
    %v186 = vunpack.c.l.b16 %v147
    %v187 = vunpack.c.l.b16 %v148
    %v188 = vunpack.c.l.b16 %v149
    %v189 = vunpack.c.l.b16 %v150
    %v190 = vunpack.c.l.b16 %v151
    %v191 = vunpack.c.l.b16 %v152
    %v192 = vunpack.c.l.b16 %v153
    %v193 = vunpack.c.l.b16 %v154
    %v194 = vunpack.c.l.b16 %v155
    %v195 = vunpack.c.l.b16 %v156
    %v196 = vunpack.c.l.b16 %v157
    %v197 = vunpack.c.l.b16 %v158
    %v198 = vunpack.c.l.b16 %v159
    %v199 = vpack.c.b16 %v184, %v183
    %v200 = vpack.c.b16 %v186, %v185
    %v201 = vpack.c.b16 %v188, %v187
    %v202 = vpack.c.b16 %v190, %v189
    %v203 = vpack.c.b16 %v192, %v191
    %v204 = vpack.c.b16 %v194, %v193
    %v205 = vpack.c.b16 %v196, %v195
    %v206 = vpack.c.b16 %v198, %v197
    %215 = vmatprep.subr.bf16.mxu0 0
    %216 = vmatpush1.bf16.msra.mxu0 %v199
    %217 = vmatprep.subr.bf16.mxu0 0
    %218 = vmatpush1.bf16.msra.mxu0 %v200
    %219 = vmatprep.subr.bf16.mxu0 0
    %220 = vmatpush1.bf16.msra.mxu0 %v201
    %221 = vmatprep.subr.bf16.mxu0 0
    %222 = vmatpush1.bf16.msra.mxu0 %v202
    %223 = vmatprep.subr.bf16.mxu0 0
    %224 = vmatpush1.bf16.msra.mxu0 %v203
    %225 = vmatprep.subr.bf16.mxu0 0
    %226 = vmatpush1.bf16.msra.mxu0 %v204
    %227 = vmatprep.subr.bf16.mxu0 0
    %228 = vmatpush1.bf16.msra.mxu0 %v205
    %229 = vmatprep.subr.bf16.mxu0 0
    %230 = vmatpush1.bf16.msra.mxu0 %v206
    %231 = vmatprep.subr.bf16.mxu0 0
    %232 = vmatpush1.bf16.msra.mxu0 0
    %233 = vmatprep.subr.bf16.mxu0 0
    %234 = vmatpush1.bf16.msra.mxu0 0
    %235 = vmatprep.subr.bf16.mxu0 0
    %236 = vmatpush1.bf16.msra.mxu0 0
    %237 = vmatprep.subr.bf16.mxu0 0
    %238 = vmatpush1.bf16.msra.mxu0 0
    %239 = vmatprep.subr.bf16.mxu0 0
    %240 = vmatpush1.bf16.msra.mxu0 0
    %241 = vmatprep.subr.bf16.mxu0 0
    %242 = vmatpush1.bf16.msra.mxu0 0
    %243 = vmatprep.subr.bf16.mxu0 0
    %244 = vmatpush1.bf16.msra.mxu0 0
    %245 = vmatprep.subr.bf16.mxu0 0
    %246 = vmatpush1.bf16.msra.mxu0 0
    %247 = vmatprep.mubr.bf16.mxu0 0
    %248 = vmatmul.mubr.bf16.gmra.mrb[0].mxu0 %v143
    %v249 = vpop.f32.mrb[0].mxu0
    %v250 = vadd.f32 %v165, %v249
    %v251 = vpop.f32.mrb[0].mxu0
    %v252 = vpop.f32.mrb[0].mxu0
    %v253 = vadd.f32 %v165, %v252
    %v254 = vpop.f32.mrb[0].mxu0
    %255 = vdwg.mxu0
    %v256 = vmax.f32 %v250, 0.0
    %v257 = vmax.f32 %v253, 0.0
    %v258 = vpack.c.bf16 %v257, %v256
    %v259 = vld [vmem:[%s5] sm:$0x1]
    %v260 = vld [vmem:[#allocation2] sm:$0x1]
    %v261 = vunpack.c.l.bf16 %v258
    %v262 = vunpack.c.h.bf16 %v258
    %v264 = vlaneseq
    %v265 = vshrl.u32 %v264, 7
    %v266 = vsub.s32 0, %v265
    %v267 = vrot.slane %v259, %v266
    %v269 = vmul.f32 %v261, %v267
    %v270 = vmul.f32 %v262, %v267
    %271 = vadd.xlane.f32.xlu0 %v269
    %v272 = vpop.xlane.xlu0 %271
    %273 = vadd.xlane.f32.xlu0 %v270
    %v274 = vpop.xlane.xlu0 %273
    %v276 = vlaneseq
    %v277 = vshrl.u32 %v276, 7
    %v278 = vsub.s32 0, %v277
    %v279 = vrot.slane %v260, %v278
    %v281 = vadd.f32 %v272, %v279
    %v282 = vadd.f32 %v274, %v279
    %v283 = vsub.f32 0.0, %v281
    %v284 = vsub.f32 0.0, %v282
    %v285 = vmul.f32 %v283, 1.442695
    %v286 = vpow.pop %v285
    %v287 = vmul.f32 %v284, 1.442695
    %v288 = vpow.pop %v287
    %v289 = vadd.f32 %v286, 1.0
    %v290 = vadd.f32 %v288, 1.0
    %v291 = vrcp.pop %v289
    %v292 = vmul.f32 1.0, %v291
    %v293 = vrcp.pop %v290
    %v294 = vmul.f32 1.0, %v293
    %vm295 = vcmask 7168
    %296 = vst.msk [vmem:[%s7] sm:$0xff] %vm295, %v292
    %297 = vst.msk [vmem:[%s7 + $0x8] sm:$0xff] %vm295, %v294
    // Predicated region
    $region42: #{tpu_custom_call.1} parent=1 // pred_check
      _
    $region43: #{tpu_custom_call.1} parent=1 // pred_check_branch
      %299 = sbr.rel (0) target = $region45
    $region44: #{tpu_custom_call.1} parent=1 // pred_region
      _
    $region45: #{tpu_custom_call.1} parent=1 // pred_fallthru
      _
    // Predicated region
    $region46: #{tpu_custom_call.1} parent=1 // pred_check
      _
    $region47: #{tpu_custom_call.1} parent=1 // pred_check_branch
      %301 = sbr.rel (0) target = $region49
    $region48: #{tpu_custom_call.1} parent=1 // pred_region
      _
    $region49: #{tpu_custom_call.1} parent=1 // pred_fallthru
      _
    %302 = vsyncpa [#allocation4], 1
    %303 = vsyncpa [#allocation6], 1

</llo_original>
